<compile_context>
chip_gen: v7x
topology: tpu7x:2x2x1
jax: 0.10.0
libtpu: 0.0.40
codegen_flags: <defaults>
</compile_context>

<pallas_src>
import functools

import jax
import jax.numpy as jnp
from jax import lax
from jax.experimental import pallas as pl
from jax.experimental.pallas import tpu as pltpu

_NSEM = 16            # outstanding row DMAs per grid step (power of two)
_ONEHOT_MAX_V = 2048  # above this, the one-hot MXU work stops being "free"


def _cdiv(a, b):
    return -(-a // b)


def _round_up(x, m):
    return _cdiv(x, m) * m


def _vmem_capacity_bytes():
    try:
        cap = int(pltpu.get_tpu_info().vmem_capacity_bytes)
        if cap > 0:
            return cap
    except Exception:
        pass
    return 64 << 20  # conservative fallback: v7x per-TensorCore VMEM


# ---------------------------------------------------------------------------
# Path 1: VMEM-resident table, exact one-hot gather on the MXU.
# ---------------------------------------------------------------------------
def _onehot_kernel(ids_ref, tab_ref, out_ref):
    # ids_ref : (tile, 1) int32 VMEM block
    # tab_ref : (V, D) table, resident in VMEM (constant block index)
    # out_ref : (tile, D) output block
    v = tab_ref.shape[0]
    tile = ids_ref.shape[0]
    # TODO(synk): PyTorch nn.Embedding raises on out-of-range ids; we clamp.
    ids = jnp.clip(ids_ref[...], 0, v - 1)                  # (tile, 1)
    cols = lax.broadcasted_iota(jnp.int32, (tile, v), 1)    # (tile, V)
    one_hot = (cols == ids).astype(tab_ref.dtype)           # exact 0/1 rows
    out = jnp.dot(one_hot, tab_ref[...], preferred_element_type=jnp.float32)
    out_ref[...] = out.astype(out_ref.dtype)


def _forward_onehot(ids_flat, table, n, tile, vmem_cap):
    v, d = table.shape
    itemsize = table.dtype.itemsize
    n_pad = _round_up(n, tile)
    grid = (n_pad // tile,)

    ids_pad = jnp.pad(ids_flat, (0, n_pad - n))    # padded tokens gather row 0
    ids_2d = ids_pad.reshape(n_pad, 1)

    d_pad = _round_up(d, 128)
    v_pad = _round_up(v, 128)
    working = (2 * _round_up(v, 8) * d_pad * itemsize  # resident table buffers
               + 2 * tile * d_pad * itemsize           # output (double-buffered)
               + 2 * tile * 128 * 4                    # ids (lane-padded)
               + tile * v_pad * 4 + tile * d_pad * 4)  # one-hot + f32 accum
    vmem_limit = int(min(vmem_cap, max(16 << 20, working + (8 << 20))))

    out_flat = pl.pallas_call(
        _onehot_kernel,
        out_shape=jax.ShapeDtypeStruct((n_pad, d), table.dtype),
        grid=grid,
        in_specs=[
            pl.BlockSpec((tile, 1), lambda i: (i, 0)),  # ids per tile (VMEM)
            pl.BlockSpec((v, d), lambda i: (0, 0)),     # whole table, resident
        ],
        out_specs=pl.BlockSpec((tile, d), lambda i: (i, 0)),
        compiler_params=pltpu.CompilerParams(
            dimension_semantics=("parallel",),
            vmem_limit_bytes=vmem_limit,
        ),
        cost_estimate=pl.CostEstimate(
            flops=2 * n_pad * v * d,
            transcendentals=0,
            bytes_accessed=v * d * itemsize + n_pad * 4 + n_pad * d * itemsize,
        ),
    )(ids_2d, table)
    return out_flat[:n]


# ---------------------------------------------------------------------------
# Path 2: table in HBM, per-row DMA gather with a deep rolling window.
# ---------------------------------------------------------------------------
def _dma_gather_kernel(n_tokens, ids_ref, tab_hbm, out_ref, sem):
    # n_tokens : static Python int (true token count, pre-padding)
    # ids_ref  : (tile,) int32 SMEM block for this grid step
    # tab_hbm  : (V, D) embedding table left in HBM (memory_space=pl.ANY)
    # out_ref  : (tile, D) VMEM output block (written only by DMAs)
    # sem      : (_NSEM,) DMA semaphores
    tile = out_ref.shape[0]
    vocab = tab_hbm.shape[0]
    base = pl.program_id(0) * tile
    valid = jnp.minimum(tile, n_tokens - base)  # real rows on this grid step
    prime = min(_NSEM, tile)

    def start_row(j, row, slot):
        pltpu.make_async_copy(
            tab_hbm.at[pl.ds(row, 1), :],
            out_ref.at[pl.ds(j, 1), :],
            sem.at[slot],
        ).start()

    def wait_slot(slot):
        # Wait needs only shape + semaphore: fixed row-0 descriptor, no id read.
        pltpu.make_async_copy(
            tab_hbm.at[pl.ds(0, 1), :],
            out_ref.at[pl.ds(0, 1), :],
            sem.at[slot],
        ).wait()

    # Prime a window of up to _NSEM outstanding row copies.
    for j in range(prime):
        # TODO(synk): PyTorch nn.Embedding raises on out-of-range ids; we clamp.
        row_j = jnp.clip(ids_ref[j], 0, vocab - 1)

        @pl.when(j < valid)
        def _():
            start_row(j, row_j, j)

    # Rolling window: retire row j, immediately refill with row j + prime.
    def body(j, carry):
        slot = j & (_NSEM - 1)
        nxt = j + prime
        # Hoist the next id read/clamp above the wait (the wait breaks SMEM
        # store->load forwarding, so keep the scalar read in front of it).
        nxt_safe = jnp.minimum(nxt, tile - 1)
        row_nxt = jnp.clip(ids_ref[nxt_safe], 0, vocab - 1)

        @pl.when(j < valid)
        def _():
            wait_slot(slot)

        @pl.when(nxt < valid)
        def _():
            start_row(nxt, row_nxt, slot)

        return carry

    lax.fori_loop(0, tile, body, 0, unroll=8)


def _forward_dma(ids_flat, table, n, tile, vmem_cap):
    v, d = table.shape
    itemsize = table.dtype.itemsize
    n_pad = _round_up(n, tile)
    grid = (n_pad // tile,)
    ids_pad = jnp.pad(ids_flat, (0, n_pad - n))

    d_pad = _round_up(d, 128)
    working = 2 * tile * d_pad * itemsize + (2 << 20)
    vmem_limit = int(min(vmem_cap, max(16 << 20, working + (8 << 20))))

    kernel = functools.partial(_dma_gather_kernel, n)

    out_flat = pl.pallas_call(
        kernel,
        out_shape=jax.ShapeDtypeStruct((n_pad, d), table.dtype),
        grid=grid,
        in_specs=[
            # Per-tile ids pipelined through SMEM (scales to arbitrary N).
            pl.BlockSpec((tile,), lambda i: (i,),
                         memory_space=pltpu.MemorySpace.SMEM),
            # Table stays in HBM; rows are gathered by explicit DMAs.
            pl.BlockSpec(memory_space=pl.ANY),
        ],
        out_specs=pl.BlockSpec((tile, d), lambda i: (i, 0)),
        scratch_shapes=[pltpu.SemaphoreType.DMA((_NSEM,))],
        compiler_params=pltpu.CompilerParams(
            dimension_semantics=("parallel",),
            vmem_limit_bytes=vmem_limit,
        ),
        cost_estimate=pl.CostEstimate(
            flops=0,
            transcendentals=0,
            bytes_accessed=2 * n * d * itemsize + n * 4,
        ),
    )(ids_pad, table)
    return out_flat[:n]


# ---------------------------------------------------------------------------
# Dispatcher (nn.Embedding forward).
# ---------------------------------------------------------------------------
@functools.partial(jax.jit, static_argnames=("token_tile", "force_path"))
def embedding_forward(ids, table, *, token_tile=1024, force_path=None):
    """Equivalent of nn.Embedding(num_embeddings, embedding_dim)(ids)."""
    b, s = ids.shape
    v, d = table.shape
    n = b * s
    itemsize = table.dtype.itemsize
    vmem_cap = _vmem_capacity_bytes()

    ids_flat = ids.reshape(n).astype(jnp.int32)

    d_pad = _round_up(d, 128)
    v_pad = _round_up(v, 128)
    table_vmem = 2 * _round_up(v, 8) * d_pad * itemsize  # double-buffered table
    table_budget = vmem_cap // 8  # ~8 MiB on v7x, ~16 MiB on v5e/v6e

    use_onehot = (v <= _ONEHOT_MAX_V) and (table_vmem <= table_budget)
    if force_path == "onehot":
        use_onehot = True
    elif force_path == "dma":
        use_onehot = False
    # TODO(synk): medium tables (V > _ONEHOT_MAX_V but still VMEM-sized) with
    # narrow rows would benefit from a resident-table dynamic-row-read path.

    # Keep >= 2 grid steps when possible so both v7x TensorCores get work.
    two_step_cap = _round_up(max(_cdiv(n, 2), 8), 8)

    if use_onehot:
        per_tok = 2 * d_pad * itemsize + 2 * 128 * 4 + v_pad * 4 + d_pad * 4
        budget = int(0.75 * vmem_cap) - table_vmem - (4 << 20)
        tile_cap = max(8, budget // per_tok) if budget > 0 else 8
        tile = max(8, (min(token_tile, tile_cap, two_step_cap) // 8) * 8)
        out_flat = _forward_onehot(ids_flat, table, n, tile, vmem_cap)
    else:
        per_tok = 2 * d_pad * itemsize
        budget = int(0.75 * vmem_cap) - (4 << 20)
        tile_cap = max(8, budget // per_tok) if budget > 0 else 8
        tile = max(8, (min(token_tile, tile_cap, two_step_cap) // 8) * 8)
        out_flat = _forward_dma(ids_flat, table, n, tile, vmem_cap)

    return out_flat.reshape(b, s, d)


if __name__ == "__main__":
    key = jax.random.PRNGKey(0)
    k_tab, k_ids, k_tab2, k_ids2 = jax.random.split(key, 4)

    # Case 1: small table (demo shapes) -> VMEM-resident one-hot path.
    num_embeddings, embedding_dim = 64, 32
    batch, seq = 2, 8
    table = jax.random.normal(k_tab, (num_embeddings, embedding_dim),
                              dtype=jnp.float32)
    ids = jax.random.randint(k_ids, (batch, seq), 0, num_embeddings,
                             dtype=jnp.int32)

    out = jax.block_until_ready(embedding_forward(ids, table))
    ref = table[ids]
    assert out.shape == (batch, seq, embedding_dim), out.shape
    assert out.dtype == table.dtype
    assert jnp.allclose(out, ref, atol=1e-6), "one-hot path mismatch"

    # Case 2: same inputs, force the HBM DMA-gather path (smoke test).
    out_dma = jax.block_until_ready(
        embedding_forward(ids, table, force_path="dma"))
    assert jnp.allclose(out_dma, ref, atol=1e-6), "DMA path mismatch"

    # Case 3: vocab above the one-hot threshold, ragged token count ->
    # auto-dispatches to the DMA path and exercises last-tile padding guards.
    v2, d2 = 2560, 128
    table2 = jax.random.normal(k_tab2, (v2, d2), dtype=jnp.float32)
    ids2 = jax.random.randint(k_ids2, (3, 5), 0, v2, dtype=jnp.int32)
    out2 = jax.block_until_ready(embedding_forward(ids2, table2))
    assert jnp.allclose(out2, table2[ids2], atol=1e-6), "padded DMA mismatch"

    print("KERNEL_OK")
</pallas_src>

<mosaic_0001>
module attributes {stable_mosaic.version = 11 : i64} {
  func.func @_onehot_kernel(%arg0: i32, %arg1: memref<8x1xi32, #tpu.memory_space<vmem>>, %arg2: memref<64x32xf32, #tpu.memory_space<vmem>>, %arg3: memref<8x32xf32, #tpu.memory_space<vmem>>) attributes {dimension_semantics = [#tpu.dimension_semantics<parallel>], iteration_bounds = array<i64: 2>, scalar_prefetch = 0 : i64, scratch_operands = 0 : i64, tpu.core_type = #tpu.core_type<tc>, window_params = [{transform_indices = @transform_0, window_bounds = array<i64: 8, 1>}, {pipeline_mode = #tpu.pipeline_mode<synchronous>, transform_indices = @transform_1, window_bounds = array<i64: 64, 32>}, {transform_indices = @transform_2, window_bounds = array<i64: 8, 32>}]} {
    %c0 = arith.constant 0 : index
    %c0_0 = arith.constant 0 : index
    %0 = vector.load %arg1[%c0, %c0_0] : memref<8x1xi32, #tpu.memory_space<vmem>>, vector<8x1xi32>
    %c0_i32 = arith.constant 0 : i32
    %c63_i32 = arith.constant 63 : i32
    %1 = vector.broadcast %c0_i32 : i32 to vector<8x1xi32>
    %2 = arith.maxsi %1, %0 : vector<8x1xi32>
    %3 = vector.broadcast %c63_i32 : i32 to vector<8x1xi32>
    %4 = arith.minsi %3, %2 : vector<8x1xi32>
    %5 = tpu.iota {dimensions = array<i32: 1>} : vector<8x64xi32>
    %6 = vector.broadcast %4 : vector<8x1xi32> to vector<8x64xi32>
    %7 = arith.cmpi eq, %5, %6 : vector<8x64xi32>
    %8 = arith.extui %7 : vector<8x64xi1> to vector<8x64xi32>
    %9 = arith.sitofp %8 : vector<8x64xi32> to vector<8x64xf32>
    %c0_1 = arith.constant 0 : index
    %c0_2 = arith.constant 0 : index
    %10 = vector.load %arg2[%c0_1, %c0_2] : memref<64x32xf32, #tpu.memory_space<vmem>>, vector<64x32xf32>
    %cst = arith.constant dense<0.000000e+00> : vector<8x32xf32>
    %11 = tpu.matmul %9, %10, %cst {dimension_numbers = #tpu.dot_dimension_numbers<[1], [0], [0], [1], [0, 0, 1, 1], [], []>} : vector<8x64xf32>, vector<64x32xf32>, vector<8x32xf32> -> vector<8x32xf32>
    %c0_3 = arith.constant 0 : index
    %c0_4 = arith.constant 0 : index
    %12 = vector.load %arg3[%c0_3, %c0_4] : memref<8x32xf32, #tpu.memory_space<vmem>>, vector<8x32xf32>
    tpu.vector_store %arg3[%c0_3, %c0_4], %11 {strides = array<i32>} : memref<8x32xf32, #tpu.memory_space<vmem>>, vector<8x32xf32>,
    return
  }
  func.func @transform_0(%arg0: i32) -> (i32, i32) {
    %c0_i32 = arith.constant 0 : i32
    %c0_i32_0 = arith.constant 0 : i32
    return %arg0, %c0_i32 : i32, i32
  }
  func.func @transform_1(%arg0: i32) -> (i32, i32) {
    %c0_i32 = arith.constant 0 : i32
    %c0_i32_0 = arith.constant 0 : i32
    %c0_i32_1 = arith.constant 0 : i32
    return %c0_i32, %c0_i32_0 : i32, i32
  }
  func.func @transform_2(%arg0: i32) -> (i32, i32) {
    %c0_i32 = arith.constant 0 : i32
    %c0_i32_0 = arith.constant 0 : i32
    return %arg0, %c0_i32 : i32, i32
  }
}

</mosaic_0001>

<llo_original>
// kernel: embedding_forward.1
$region0: #{embedding_forward.1}
  #allocation0 [shape = 'u32[]', space=smem, size = 0x4, offset = 0x4, fixed_abs, tag = 'smem constant byte address 0x4 - core index']
  #allocation1 [shape = 'u32[144,128]{1,0:T(1,128)}', space=vmem, size = 0x12000, scoped, tag = 'internal scratch']
  %s0 = inlined_call_operand.vmem [shape: s32[16,1], index: 0, kind: input, shape index: {}]
  %s1 = inlined_call_operand.vmem [shape: f32[64,32], index: 1, kind: input, shape index: {}]
  %s2 = inlined_call_operand.hbm [shape: f32[16,32], index: 2, kind: output, shape index: {}]
  %s3 = sld [smem:[#allocation0]]
  $region41: #{embedding_forward.1} parent=0
    _
  %s5 = ssub.s32 1, %s3
  %s6 = scalar_select 0, %s5, %s3
  $region1: #{embedding_forward.1} parent=0
    #allocation2 [shape = 'u8[8192]{0}', space=vmem, size = 0x2000, scoped, tag = 'output window, operand 0']
    #allocation3 [shape = 's32[2]{0}', space=sflag, size = 0x8, scoped, tag = 'scoped memory for embedding_forward.1']
    %7 = vsyncpa [#allocation3], 0
    %s8 = scalar_lea.sflag [#allocation3], 1
    %9 = vsyncpa %s8, 0
    loop: start=0, step=1, limit=4
    $region2: #{embedding_forward.1} parent=1 // loop_pre_header
      _
    $region3: #{embedding_forward.1} parent=1 // loop_header
      %s11 = sphi 0, %s15
      %p12 = scmp.ge.s32.totalorder %s11, 4
      %s21 = sphi 0, %s23
      %s24 = sphi 0, %s21
      %s25 = sphi 0, %s24
      %s41 = sphi 0, %s25
      %s45 = sphi 0, %s45
      %s47 = sphi 0, %s45
      %s48 = sphi 0, %s47
      %s62 = sphi 0, %s48
      %s68 = sphi 0, %s70
      %s71 = sphi 0, %s68
      %s72 = sphi 0, %s71
      %s88 = sphi 0, %s72
    $region4: #{embedding_forward.1} parent=1 // loop_header_branch
      %14 = sbr.rel (%p12) target = $region8
    $region5: #{embedding_forward.1} parent=1 // loop_body
      %s16 = ssub.s32 %s11, 1
      %s17 = ssub.s32 %s11, 2
      %s18 = sadd.s32 %s11, 1
      %s19 = ssub.s32 %s11, %s18
      %p20 = scmp.eq.s32.totalorder %s19, 0
      %s22 = sadd.s32 %s21, 1
      %s23 = scalar_select %p20, %s21, %s22
      %p26 = pneg %p20
      %p27 = scmp.eq.s32.totalorder %s11, 1
      %p28 = por %p26, %p27
      %p29 = scmp.ne.s32.totalorder %s21, %s24
      %p30 = scmp.eq.s32.totalorder %s11, 0
      %p31 = por %p29, %p30
      %p32 = scmp.ne.s32.totalorder %s21, %s24
      %p33 = scmp.eq.s32.totalorder %s16, 1
      %p34 = por %p32, %p33
      %p35 = scmp.ne.s32.totalorder %s24, %s25
      %p36 = scmp.eq.s32.totalorder %s16, 0
      %p37 = por %p35, %p36
      %p38 = scmp.ne.s32.totalorder %s24, %s25
      %p39 = scmp.eq.s32.totalorder %s17, 1
      %p40 = por %p38, %p39
      %p42 = scmp.ne.s32.totalorder %s25, %s41
      %p43 = scmp.eq.s32.totalorder %s17, 0
      %p44 = por %p42, %p43
      %s46 = sadd.s32 %s45, 1
      %p49 = scmp.eq.s32.totalorder %s11, 1
      %p50 = scmp.ne.s32.totalorder %s45, %s47
      %p51 = scmp.eq.s32.totalorder %s11, 0
      %p52 = por %p50, %p51
      %p53 = scmp.ne.s32.totalorder %s45, %s47
      %p54 = scmp.eq.s32.totalorder %s16, 1
      %p55 = por %p53, %p54
      %p56 = scmp.ne.s32.totalorder %s47, %s48
      %p57 = scmp.eq.s32.totalorder %s16, 0
      %p58 = por %p56, %p57
      %p59 = scmp.ne.s32.totalorder %s47, %s48
      %p60 = scmp.eq.s32.totalorder %s17, 1
      %p61 = por %p59, %p60
      %p63 = scmp.ne.s32.totalorder %s48, %s62
      %p64 = scmp.eq.s32.totalorder %s17, 0
      %p65 = por %p63, %p64
      %s66 = ssub.s32 %s11, %s18
      %p67 = scmp.eq.s32.totalorder %s66, 0
      %s69 = sadd.s32 %s68, 1
      %s70 = scalar_select %p67, %s68, %s69
      %p73 = pneg %p67
      %p74 = scmp.eq.s32.totalorder %s11, 1
      %p75 = por %p73, %p74
      %p76 = scmp.ne.s32.totalorder %s68, %s71
      %p77 = scmp.eq.s32.totalorder %s11, 0
      %p78 = por %p76, %p77
      %p79 = scmp.ne.s32.totalorder %s68, %s71
      %p80 = scmp.eq.s32.totalorder %s16, 1
      %p81 = por %p79, %p80
      %p82 = scmp.ne.s32.totalorder %s71, %s72
      %p83 = scmp.eq.s32.totalorder %s16, 0
      %p84 = por %p82, %p83
      %p85 = scmp.ne.s32.totalorder %s71, %s72
      %p86 = scmp.eq.s32.totalorder %s17, 1
      %p87 = por %p85, %p86
      %p89 = scmp.ne.s32.totalorder %s72, %s88
      %p90 = scmp.eq.s32.totalorder %s17, 0
      %p91 = por %p89, %p90
      %p92 = scmp.le.s32.totalorder 1, %s11
      %p93 = scmp.lt.s32.totalorder %s11, 3
      %p94 = pnand %p92, %p93
      %p95 = pneg %p94
      // Predicated region
      $region9: #{embedding_forward.1} parent=5 // pred_check
        _
      $region10: #{embedding_forward.1} parent=5 // pred_check_branch
        %97 = sbr.rel (%p94) target = $region12
      $region11: #{embedding_forward.1} parent=5 // pred_region
        %s98 = ssub.s32 %s11, 1
        // Predicated region
        $region13: #{embedding_forward.1} parent=11 // pred_check
          %p99 = pneg %p58
        $region14: #{embedding_forward.1} parent=11 // pred_check_branch
          %101 = sbr.rel (%p99) target = $region16
        $region15: #{embedding_forward.1} parent=11 // pred_region
          _
        $region16: #{embedding_forward.1} parent=11 // pred_fallthru
          _
      $region12: #{embedding_forward.1} parent=5 // pred_fallthru
        _
      %p102 = scmp.lt.s32.totalorder %s11, 2
      // Predicated region
      $region17: #{embedding_forward.1} parent=5 // pred_check
        %p103 = pneg %p102
      $region18: #{embedding_forward.1} parent=5 // pred_check_branch
        %105 = sbr.rel (%p103) target = $region20
      $region19: #{embedding_forward.1} parent=5 // pred_region
        // Predicated region
        $region21: #{embedding_forward.1} parent=19 // pred_check
          %p106 = pneg %p31
        $region22: #{embedding_forward.1} parent=19 // pred_check_branch
          %108 = sbr.rel (%p106) target = $region24
        $region23: #{embedding_forward.1} parent=19 // pred_region
          %p109 = scmp.lt.s32.totalorder %s11, 1
          %s110 = scalar_select %p109, %s11, 1
          %s111 = smul.addr %s110, 8
          %s112 = scalar_lea.vmem %s0, %s111
        $region24: #{embedding_forward.1} parent=19 // pred_fallthru
          _
      $region20: #{embedding_forward.1} parent=5 // pred_fallthru
        _
      %p113 = scmp.le.s32.totalorder 1, %s11
      %p114 = scmp.lt.s32.totalorder %s11, 3
      %p115 = pnand %p113, %p114
      %p116 = pneg %p115
      // Predicated region
      $region25: #{embedding_forward.1} parent=5 // pred_check
        _
      $region26: #{embedding_forward.1} parent=5 // pred_check_branch
        %118 = sbr.rel (%p115) target = $region28
      $region27: #{embedding_forward.1} parent=5 // pred_region
        %s119 = ssub.s32 %s11, 1
        %p120 = scmp.lt.s32.totalorder %s16, 1
        %s121 = scalar_select %p120, %s16, 1
        %s122 = smul.addr %s121, 8
        %s123 = scalar_lea.vmem %s0, %s122
        %p124 = pneg %p37
        %p125 = pneg %p34
        %p126 = pneg %p58
        %p127 = pneg %p55
        %p128 = pneg %p84
        %p129 = pneg %p81
        %s130 = sand.u32 %s71, 1
        %s131 = scalar_lea.sflag [#allocation3], %s130
        %s132 = sand.u32 %s71, 1
        %s133 = smul.addr %s132, 8
        %s134 = scalar_lea.vmem [#allocation2], %s133
        %p135 = scmp.lt.s32.totalorder %s16, 1
        %s136 = scalar_select %p135, %s16, 1
        %s137 = smul.addr %s136, 8
        %s138 = scalar_lea.vmem %s0, %s137
        %v139 = vld [vmem:[%s138] sm:$0xff]
        %vm140 = vcmp.gt.s32.totalorder %v139, 0
        %v141 = vsel %vm140, %v139, 0
        %vm142 = vcmp.lt.s32.totalorder %v141, 63
        %v143 = vsel %vm142, %v141, 63
        %v144 = vlaneseq
        %v145 = vand.u32 %v144, 127
        %146 = vset.pattern.permute.xlu0 0
        %147 = vperm.xlu0 %146, %v143
        %v148 = vpop.permute.xlu0 %147
        %vm149 = vcmp.eq.s32.totalorder %v145, %v148
        %v150 = vsel %vm149, 1, 0
        %v151 = vcvt.s32.f32 %v150
        %v152 = vld [vmem:[%s1] sm:$0xff]
        %v153 = vld [vmem:[%s1 + $0x8] sm:$0xff]
        %v154 = vld [vmem:[%s1 + $0x10] sm:$0xff]
        %v155 = vld [vmem:[%s1 + $0x18] sm:$0xff]
        %v156 = vld [vmem:[%s1 + $0x20] sm:$0xff]
        %v157 = vld [vmem:[%s1 + $0x28] sm:$0xff]
        %v158 = vld [vmem:[%s1 + $0x30] sm:$0xff]
        %v159 = vld [vmem:[%s1 + $0x38] sm:$0xff]
        %vm160 = vcmask 523264
        %v162 = vsel %vm160, %v151, 0
        %164 = vmatprep.subr.mxu0 0.0
        %165 = vmatpush1.msra.mxu0 %v152
        %166 = vmatprep.subr.mxu0 0.0
        %167 = vmatpush1.msra.mxu0 %v153
        %168 = vmatprep.subr.mxu0 0.0
        %169 = vmatpush1.msra.mxu0 %v154
        %170 = vmatprep.subr.mxu0 0.0
        %171 = vmatpush1.msra.mxu0 %v155
        %172 = vmatprep.subr.mxu0 0.0
        %173 = vmatpush1.msra.mxu0 %v156
        %174 = vmatprep.subr.mxu0 0.0
        %175 = vmatpush1.msra.mxu0 %v157
        %176 = vmatprep.subr.mxu0 0.0
        %177 = vmatpush1.msra.mxu0 %v158
        %178 = vmatprep.subr.mxu0 0.0
        %179 = vmatpush1.msra.mxu0 %v159
        %180 = vmatprep.subr.mxu0 0.0
        %181 = vmatpush1.msra.mxu0 0.0
        %182 = vmatprep.subr.mxu0 0.0
        %183 = vmatpush1.msra.mxu0 0.0
        %184 = vmatprep.subr.mxu0 0.0
        %185 = vmatpush1.msra.mxu0 0.0
        %186 = vmatprep.subr.mxu0 0.0
        %187 = vmatpush1.msra.mxu0 0.0
        %188 = vmatprep.subr.mxu0 0.0
        %189 = vmatpush1.msra.mxu0 0.0
        %190 = vmatprep.subr.mxu0 0.0
        %191 = vmatpush1.msra.mxu0 0.0
        %192 = vmatprep.subr.mxu0 0.0
        %193 = vmatpush1.msra.mxu0 0.0
        %194 = vmatprep.subr.mxu0 0.0
        %195 = vmatpush1.msra.mxu0 0.0
        %196 = vmatprep.subr.mxu0 0.0
        %197 = vmatpush1.msra.mxu0 0.0
        %198 = vmatprep.subr.mxu0 0.0
        %199 = vmatpush1.msra.mxu0 0.0
        %200 = vmatprep.subr.mxu0 0.0
        %201 = vmatpush1.msra.mxu0 0.0
        %202 = vmatprep.subr.mxu0 0.0
        %203 = vmatpush1.msra.mxu0 0.0
        %204 = vmatprep.subr.mxu0 0.0
        %205 = vmatpush1.msra.mxu0 0.0
        %206 = vmatprep.subr.mxu0 0.0
        %207 = vmatpush1.msra.mxu0 0.0
        %208 = vmatprep.subr.mxu0 0.0
        %209 = vmatpush1.msra.mxu0 0.0
        %210 = vmatprep.subr.mxu0 0.0
        %211 = vmatpush1.msra.mxu0 0.0
        %212 = vmatprep.subr.mxu0 0.0
        %213 = vmatpush1.msra.mxu0 0.0
        %214 = vmatprep.subr.mxu0 0.0
        %215 = vmatpush1.msra.mxu0 0.0
        %216 = vmatprep.subr.mxu0 0.0
        %217 = vmatpush1.msra.mxu0 0.0
        %218 = vmatprep.subr.mxu0 0.0
        %219 = vmatpush1.msra.mxu0 0.0
        %220 = vmatprep.subr.mxu0 0.0
        %221 = vmatpush1.msra.mxu0 0.0
        %222 = vmatprep.subr.mxu0 0.0
        %223 = vmatpush1.msra.mxu0 0.0
        %224 = vmatprep.subr.mxu0 0.0
        %225 = vmatpush1.msra.mxu0 0.0
        %226 = vmatprep.subr.mxu0 0.0
        %227 = vmatpush1.msra.mxu0 0.0
        %228 = vmatprep.mubr.f32.mxu0 0.0
        %229 = vmatmul.mubr.f32.gmra.mrb[0].mxu0 %v162
        %v230 = vpop.f32.mrb[0].mxu0
        %v231 = vadd.f32 0.0, %v230
        %v232 = vpop.f32.mrb[0].mxu0
        %233 = vdwg.mxu0
        %vm234 = vcmask 261120
        %235 = vst.msk [vmem:[%s134] sm:$0xff] %vm234, %v231
        %s236 = sand.u32 %s71, 1
        %s237 = scalar_lea.sflag [#allocation3], %s236
        %s238 = sand.u32 %s71, 1
        %s239 = smul.addr %s238, 8
        %s240 = scalar_lea.vmem [#allocation2], %s239
        // Predicated region
        $region29: #{embedding_forward.1} parent=27 // pred_check
          %p241 = pneg %p81
        $region30: #{embedding_forward.1} parent=27 // pred_check_branch
          %243 = sbr.rel (%p241) target = $region32
        $region31: #{embedding_forward.1} parent=27 // pred_region
          %s245 = ssub.s32 128, 128
          %246 = vsyncadd %s237, %s245
          %s247 = smul.addr %s16, 128
          %s248 = scalar_lea.hbm %s2, %s247
          %s250 = sshll.u32 %s240, 4
          %s251 = int_to_ptr.vmem [resolvable:$true] %s250
          %253 = dma.vmem_to_hbm [thread:$0]  %s251, 128, %s248, %s237
        $region32: #{embedding_forward.1} parent=27 // pred_fallthru
          _
      $region28: #{embedding_forward.1} parent=5 // pred_fallthru
        _
      %p254 = scmp.le.s32.totalorder 2, %s11
      // Predicated region
      $region33: #{embedding_forward.1} parent=5 // pred_check
        %p255 = pneg %p254
      $region34: #{embedding_forward.1} parent=5 // pred_check_branch
        %257 = sbr.rel (%p255) target = $region36
      $region35: #{embedding_forward.1} parent=5 // pred_region
        %s258 = ssub.s32 %s11, 2
        // Predicated region
        $region37: #{embedding_forward.1} parent=35 // pred_check
          %p259 = pneg %p87
        $region38: #{embedding_forward.1} parent=35 // pred_check_branch
          %261 = sbr.rel (%p259) target = $region40
        $region39: #{embedding_forward.1} parent=35 // pred_region
          %s262 = sand.u32 %s72, 1
          %s263 = scalar_lea.sflag [#allocation3], %s262
          %s264 = sand.u32 %s72, 1
          %s265 = smul.addr %s264, 8
          %s266 = scalar_lea.vmem [#allocation2], %s265
          %267 = dma.done %s263, 128
        $region40: #{embedding_forward.1} parent=35 // pred_fallthru
          _
      $region36: #{embedding_forward.1} parent=5 // pred_fallthru
        _
    $region6: #{embedding_forward.1} parent=1 // loop_footer
      %s15 = sadd.s32 1, %s11
    $region7: #{embedding_forward.1} parent=1 // loop_footer_branch
      %10 = sbr.rel target = $region3
    $region8: #{embedding_forward.1} parent=1 // loop_exit
      _
    %268 = vsyncpa [#allocation3], 1
    %s269 = scalar_lea.sflag [#allocation3], 1
    %270 = vsyncpa %s269, 1

</llo_original>
